<compile_context>
chip_gen: v5e
topology: v5e:2x2
jax: 0.10.0
libtpu: 0.0.40
codegen_flags: <defaults>
</compile_context>

<pallas_src>
import jax
import jax.numpy as jnp
from jax.experimental import pallas as pl
from jax.experimental.pallas import tpu as pltpu


# ---------------------------------------------------------------------------
# Kernels
# ---------------------------------------------------------------------------
def _linear_kernel_f32_out(x_ref, w_ref, b_ref, o_ref):
    """f32 output: accumulate directly into the K-resident output block."""
    # x_ref: (tm, tk)  w_ref: (tk, tn)  b_ref: (1, tn) f32  o_ref: (tm, tn) f32
    k = pl.program_id(2)
    prod = jnp.dot(x_ref[...], w_ref[...], preferred_element_type=jnp.float32)

    @pl.when(k == 0)
    def _():
        o_ref[...] = prod + b_ref[...]

    @pl.when(k != 0)
    def _():
        o_ref[...] += prod


def _linear_kernel_acc(x_ref, w_ref, b_ref, o_ref, acc_ref):
    """Sub-32-bit output: f32 VMEM accumulator, cast on the final K step."""
    k = pl.program_id(2)
    prod = jnp.dot(x_ref[...], w_ref[...], preferred_element_type=jnp.float32)

    @pl.when(k == 0)
    def _():
        acc_ref[...] = prod

    @pl.when(k != 0)
    def _():
        acc_ref[...] += prod

    @pl.when(k == pl.num_programs(2) - 1)
    def _():
        o_ref[...] = (acc_ref[...] + b_ref[...]).astype(o_ref.dtype)


# ---------------------------------------------------------------------------
# Helpers
# ---------------------------------------------------------------------------
def _round_up(x, m):
    return ((x + m - 1) // m) * m


def _sublane_align(dtype):
    bits = jnp.dtype(dtype).itemsize * 8
    if bits >= 32:
        return 8
    if bits == 16:
        return 16
    return 32


def _pick_tm(m, tm_max, align):
    """Row tile: avoid padding M up to a full tm_max multiple."""
    m = max(int(m), 1)
    tm_max = max(_round_up(tm_max, align), align)
    if m <= tm_max:
        return _round_up(m, align)
    steps = -(-m // tm_max)                 # cdiv(m, tm_max)
    return _round_up(-(-m // steps), align)  # round_up(ceil(m / steps))


def _vmem_budget_bytes():
    try:
        cap = pltpu.get_tpu_info().vmem_capacity_bytes
    except Exception:
        cap = 64 * 1024 * 1024  # conservative (v7x-sized) fallback
    return int(cap * 0.7)


def _make_block_spec(shape, index_map, buffer_count=None):
    if buffer_count is not None:
        try:
            return pl.BlockSpec(shape, index_map, pipeline_mode=pl.Buffered(buffer_count))
        except Exception:
            pass
    return pl.BlockSpec(shape, index_map)


# ---------------------------------------------------------------------------
# Parameter preparation (one-time; keep out of the hot path)
# ---------------------------------------------------------------------------
def prepare_meta_linear_params(weight, bias, *, compute_dtype=jnp.bfloat16,
                               tn=1024, tk=1024):
    """Pad, cast and transpose W / b once.

    weight: (out_features, in_features)  -- PyTorch convention
    bias:   (out_features,)
    Returns a dict consumed by meta_linear(..., params=...).
    """
    out_features, in_features = weight.shape
    tn = min(tn, _round_up(out_features, 128))
    tk = min(tk, _round_up(in_features, 128))
    n_pad = _round_up(out_features, tn)
    k_pad = _round_up(in_features, tk)

    w = weight
    if (n_pad, k_pad) != (out_features, in_features):
        w = jnp.pad(w, ((0, n_pad - out_features), (0, k_pad - in_features)))
    # (K, N) layout: the kernel contracts ((1,),(0,)) -> no per-step transpose.
    w_t = jnp.asarray(w.T, dtype=compute_dtype)

    b = jnp.asarray(bias, dtype=jnp.float32).reshape(1, out_features)
    if n_pad != out_features:
        b = jnp.pad(b, ((0, 0), (0, n_pad - out_features)))

    return {
        "w_t": w_t, "b": b,
        "out_features": out_features, "in_features": in_features,
        "n_pad": n_pad, "k_pad": k_pad, "tn": tn, "tk": tk,
        "compute_dtype": jnp.dtype(compute_dtype),
    }


# ---------------------------------------------------------------------------
# Forward pass
# ---------------------------------------------------------------------------
def _meta_linear_apply(x, params, *, tm_max=512):
    out_features = params["out_features"]
    in_features = params["in_features"]
    n_pad, k_pad = params["n_pad"], params["k_pad"]
    tn, tk = params["tn"], params["tk"]
    compute_dtype = params["compute_dtype"]
    w_t, b = params["w_t"], params["b"]

    assert x.shape[-1] == in_features
    lead_shape = x.shape[:-1]
    out_dtype = x.dtype
    use_acc = out_dtype != jnp.float32  # f32 outputs accumulate in-place in o_ref

    x2d = x.reshape(-1, in_features)
    m = x2d.shape[0]
    m_align = _sublane_align(compute_dtype)
    tm = _pick_tm(m, tm_max, m_align)
    m_pad = _round_up(m, tm)

    # Give v7x's second TensorCore work if the parallel grid collapsed to 1.
    if (m_pad // tm) * (n_pad // tn) == 1:
        if tn >= 256:
            tn //= 2
        elif tm >= 2 * m_align and tm % (2 * m_align) == 0:
            tm //= 2

    x_p = x2d
    if (m_pad, k_pad) != x2d.shape:
        x_p = jnp.pad(x2d, ((0, m_pad - m), (0, k_pad - in_features)))
    if x_p.dtype != compute_dtype:
        x_p = x_p.astype(compute_dtype)

    grid = (m_pad // tm, n_pad // tn, k_pad // tk)
    grid_m, grid_n, grid_k = grid

    # Deeper weight buffering for small-M, weight-bandwidth-bound shapes.
    w_buffers = 3 if (m_pad <= 256 and grid_n * grid_k >= 3) else None

    in_b = jnp.dtype(compute_dtype).itemsize
    out_b = jnp.dtype(out_dtype).itemsize
    footprint = (2 * tm * tk * in_b + (w_buffers or 2) * tk * tn * in_b
                 + 2 * tn * 4 + 2 * tm * tn * out_b
                 + (tm * tn * 4 if use_acc else 0))
    vmem_limit = int(min(_vmem_budget_bytes(),
                         max(32 * 1024 * 1024, footprint + 16 * 1024 * 1024)))

    cost = pl.CostEstimate(
        flops=2 * m_pad * n_pad * k_pad,
        transcendentals=0,
        bytes_accessed=(m_pad * k_pad * in_b * grid_n
                        + k_pad * n_pad * in_b * grid_m
                        + n_pad * 4
                        + m_pad * n_pad * out_b),
    )

    kernel = _linear_kernel_acc if use_acc else _linear_kernel_f32_out
    scratch = [pltpu.VMEM((tm, tn), jnp.float32)] if use_acc else []

    def _run(weight_buffers):
        return pl.pallas_call(
            kernel,
            out_shape=jax.ShapeDtypeStruct((m_pad, n_pad), out_dtype),
            grid=grid,
            in_specs=[
                pl.BlockSpec((tm, tk), lambda i, j, k: (i, k)),
                _make_block_spec((tk, tn), lambda i, j, k: (k, j), weight_buffers),
                pl.BlockSpec((1, tn), lambda i, j, k: (0, j)),
            ],
            out_specs=pl.BlockSpec((tm, tn), lambda i, j, k: (i, j)),
            scratch_shapes=scratch,
            compiler_params=pltpu.CompilerParams(
                dimension_semantics=("parallel", "parallel", "arbitrary"),
                vmem_limit_bytes=vmem_limit,
            ),
            cost_estimate=cost,
        )(x_p, w_t, b)

    if w_buffers is not None:
        try:
            out = _run(w_buffers)
        except Exception:  # fall back to default double buffering
            out = _run(None)
    else:
        out = _run(None)

    out = out[:m, :out_features]
    return out.reshape(*lead_shape, out_features)


def meta_linear(x, weight=None, bias=None, *, params=None,
                compute_dtype=jnp.bfloat16, tm=512, tn=1024, tk=1024):
    """Equivalent of torch.nn.functional.linear(x, weight, bias).

    Pass (weight, bias) for a one-shot call, or a pre-built `params` from
    prepare_meta_linear_params() to keep the pad/cast/transpose of W out of
    the hot path. bf16 compute (f32 accumulation) is the default MXU fast
    path; pass compute_dtype=jnp.float32 for exact f32 numerics.
    """
    if params is None:
        params = prepare_meta_linear_params(
            weight, bias, compute_dtype=compute_dtype, tn=tn, tk=tk)
    return _meta_linear_apply(x, params, tm_max=tm)


def _ref_linear(x, weight, bias):
    return jnp.einsum("...i,oi->...o", x.astype(jnp.float32),
                      weight.astype(jnp.float32)) + bias.astype(jnp.float32)


# TODO(synk): MetaModule's meta-learning bookkeeping (named_params/update_params/
# set_param/copy) is host-side parameter plumbing with no kernel equivalent;
# only the forward F.linear is implemented here.

if __name__ == "__main__":
    # Shapes consistent with MetaLinear(in_features=32, out_features=32)
    batch, seq, in_features, out_features = 2, 8, 32, 32

    key = jax.random.PRNGKey(0)
    kx, kw, kb, kx2 = jax.random.split(key, 4)

    scale = 1.0 / jnp.sqrt(jnp.float32(in_features))
    weight = jax.random.uniform(kw, (out_features, in_features), jnp.float32, -scale, scale)
    bias = jax.random.uniform(kb, (out_features,), jnp.float32, -scale, scale)
    x = jax.random.normal(kx, (batch, seq, in_features), jnp.float32)

    y_ref = _ref_linear(x, weight, bias)

    # Default fast path: bf16 MXU compute, f32 accumulation, f32 output.
    params = prepare_meta_linear_params(weight, bias)  # pad/cast/transpose once
    y = jax.block_until_ready(meta_linear(x, params=params))
    assert y.shape == (batch, seq, out_features)
    assert jnp.allclose(y, y_ref, atol=3e-2, rtol=3e-2), "bf16 path mismatch"

    # Exact f32 compute path (tight tolerance vs reference).
    y32 = jax.block_until_ready(meta_linear(x, weight, bias, compute_dtype=jnp.float32))
    assert jnp.allclose(y32, y_ref, atol=1e-5, rtol=1e-5), "f32 path mismatch"

    # Non-tile-aligned leading shape, reusing the prepared params (hot path).
    x2 = jax.random.normal(kx2, (3, 7, in_features), jnp.float32)
    y2 = jax.block_until_ready(meta_linear(x2, params=params))
    assert jnp.allclose(y2, _ref_linear(x2, weight, bias), atol=3e-2, rtol=3e-2)

    # Multi-step K/N grid with bf16 output (exercises the scratch-accumulator
    # kernel and the deep-buffered weight stream).
    in2, out2 = 384, 256
    s2 = 1.0 / jnp.sqrt(jnp.float32(in2))
    w2 = jax.random.uniform(kw, (out2, in2), jnp.float32, -s2, s2)
    b2 = jax.random.uniform(kb, (out2,), jnp.float32, -s2, s2)
    x3 = jax.random.normal(kx, (4, 6, in2), jnp.float32).astype(jnp.bfloat16)
    y3 = jax.block_until_ready(meta_linear(x3, w2, b2, tn=128, tk=128))
    assert y3.dtype == jnp.bfloat16
    assert jnp.allclose(y3.astype(jnp.float32), _ref_linear(x3, w2, b2),
                        atol=5e-2, rtol=5e-2)

    print("KERNEL_OK")
</pallas_src>

<mosaic_0001>
module attributes {stable_mosaic.version = 11 : i64} {
  func.func @_linear_kernel_f32_out(%arg0: i32, %arg1: i32, %arg2: i32, %arg3: memref<16x128xbf16, #tpu.memory_space<vmem>>, %arg4: memref<128x128xbf16, #tpu.memory_space<vmem>>, %arg5: memref<1x128xf32, #tpu.memory_space<vmem>>, %arg6: memref<16x128xf32, #tpu.memory_space<vmem>>) attributes {dimension_semantics = [#tpu.dimension_semantics<parallel>, #tpu.dimension_semantics<parallel>, #tpu.dimension_semantics<arbitrary>], iteration_bounds = array<i64: 1, 1, 1>, scalar_prefetch = 0 : i64, scratch_operands = 0 : i64, tpu.core_type = #tpu.core_type<tc>, window_params = [{transform_indices = @transform_0, window_bounds = array<i64: 16, 128>}, {transform_indices = @transform_1, window_bounds = array<i64: 128, 128>}, {transform_indices = @transform_2, window_bounds = array<i64: 1, 128>}, {transform_indices = @transform_3, window_bounds = array<i64: 16, 128>}]} {
    %c0 = arith.constant 0 : index
    %c0_0 = arith.constant 0 : index
    %0 = vector.load %arg3[%c0, %c0_0] : memref<16x128xbf16, #tpu.memory_space<vmem>>, vector<16x128xbf16>
    %c0_1 = arith.constant 0 : index
    %c0_2 = arith.constant 0 : index
    %1 = vector.load %arg4[%c0_1, %c0_2] : memref<128x128xbf16, #tpu.memory_space<vmem>>, vector<128x128xbf16>
    %cst = arith.constant dense<0.000000e+00> : vector<16x128xf32>
    %2 = tpu.matmul %0, %1, %cst {dimension_numbers = #tpu.dot_dimension_numbers<[1], [0], [0], [1], [0, 0, 1, 1], [], []>} : vector<16x128xbf16>, vector<128x128xbf16>, vector<16x128xf32> -> vector<16x128xf32>
    %c0_i32 = arith.constant 0 : i32
    %3 = arith.cmpi eq, %arg2, %c0_i32 : i32
    %4 = arith.extui %3 : i1 to i32
    %c0_i32_3 = arith.constant 0 : i32
    %5 = arith.cmpi ne, %4, %c0_i32_3 : i32
    scf.if %5 {
      %c0_6 = arith.constant 0 : index
      %c0_7 = arith.constant 0 : index
      %9 = vector.load %arg5[%c0_6, %c0_7] : memref<1x128xf32, #tpu.memory_space<vmem>>, vector<1x128xf32>
      %10 = vector.broadcast %9 : vector<1x128xf32> to vector<16x128xf32>
      %11 = arith.addf %2, %10 : vector<16x128xf32>
      %c0_8 = arith.constant 0 : index
      %c0_9 = arith.constant 0 : index
      %12 = vector.load %arg6[%c0_8, %c0_9] : memref<16x128xf32, #tpu.memory_space<vmem>>, vector<16x128xf32>
      tpu.vector_store %arg6[%c0_8, %c0_9], %11 {strides = array<i32>} : memref<16x128xf32, #tpu.memory_space<vmem>>, vector<16x128xf32>,
    } else {
    }
    %c0_i32_4 = arith.constant 0 : i32
    %6 = arith.cmpi ne, %arg2, %c0_i32_4 : i32
    %7 = arith.extui %6 : i1 to i32
    %c0_i32_5 = arith.constant 0 : i32
    %8 = arith.cmpi ne, %7, %c0_i32_5 : i32
    scf.if %8 {
      %c0_6 = arith.constant 0 : index
      %c0_7 = arith.constant 0 : index
      %9 = vector.load %arg6[%c0_6, %c0_7] : memref<16x128xf32, #tpu.memory_space<vmem>>, vector<16x128xf32>
      %10 = arith.addf %9, %2 : vector<16x128xf32>
      %c0_8 = arith.constant 0 : index
      %c0_9 = arith.constant 0 : index
      %11 = vector.load %arg6[%c0_8, %c0_9] : memref<16x128xf32, #tpu.memory_space<vmem>>, vector<16x128xf32>
      tpu.vector_store %arg6[%c0_8, %c0_9], %10 {strides = array<i32>} : memref<16x128xf32, #tpu.memory_space<vmem>>, vector<16x128xf32>,
    } else {
    }
    return
  }
  func.func @transform_0(%arg0: i32, %arg1: i32, %arg2: i32) -> (i32, i32) {
    %c0_i32 = arith.constant 0 : i32
    return %arg0, %arg2 : i32, i32
  }
  func.func @transform_1(%arg0: i32, %arg1: i32, %arg2: i32) -> (i32, i32) {
    %c0_i32 = arith.constant 0 : i32
    return %arg2, %arg1 : i32, i32
  }
  func.func @transform_2(%arg0: i32, %arg1: i32, %arg2: i32) -> (i32, i32) {
    %c0_i32 = arith.constant 0 : i32
    %c0_i32_0 = arith.constant 0 : i32
    return %c0_i32, %arg1 : i32, i32
  }
  func.func @transform_3(%arg0: i32, %arg1: i32, %arg2: i32) -> (i32, i32) {
    %c0_i32 = arith.constant 0 : i32
    return %arg0, %arg1 : i32, i32
  }
}

</mosaic_0001>

<llo_original>
// kernel: tpu_custom_call.1
$region0: #{tpu_custom_call.1}
  #allocation0 [shape = 'u32[]', space=smem, size = 0x4, offset = 0x4, fixed_abs, tag = 'smem constant byte address 0x4 - core index']
  #allocation1 [shape = 'u32[72,128]{1,0:T(1,128)}', space=vmem, size = 0x9000, scoped, tag = 'internal scratch']
  %s0 = inlined_call_operand.hbm [shape: bf16[16,128], index: 0, kind: input, shape index: {}]
  %s1 = inlined_call_operand.hbm [shape: bf16[128,128], index: 1, kind: input, shape index: {}]
  %s2 = inlined_call_operand.vmem [shape: f32[1,128], index: 2, kind: input, shape index: {}]
  %s3 = inlined_call_operand.hbm [shape: f32[16,128], index: 3, kind: output, shape index: {}]
  %s4 = sld [smem:[#allocation0]]
  $region38: #{tpu_custom_call.1} parent=0
    _
  %s6 = ssub.s32 1, %s4
  %s7 = scalar_select 0, %s6, %s4
  $region1: #{tpu_custom_call.1} parent=0
    #allocation2 [shape = 'u8[4096]{0}', space=vmem, size = 0x1000, scoped, tag = 'input window, operand 0, single buffered']
    #allocation3 [shape = 's32[1]{0}', space=sflag, size = 0x4, scoped, tag = 'scoped memory for tpu_custom_call.1']
    #allocation4 [shape = 's32[1]{0}', space=sflag, size = 0x4, scoped, tag = 'scoped memory for tpu_custom_call.1']
    #allocation5 [shape = 'u8[32768]{0}', space=vmem, size = 0x8000, scoped, tag = 'input window, operand 1, single buffered']
    #allocation6 [shape = 's32[1]{0}', space=sflag, size = 0x4, scoped, tag = 'scoped memory for tpu_custom_call.1']
    #allocation7 [shape = 'u8[8192]{0}', space=vmem, size = 0x2000, scoped, tag = 'output window, operand 0, single buffered']
    %8 = vsyncpa [#allocation3], 0
    %9 = vsyncpa [#allocation6], 0
    %10 = vsyncpa [#allocation4], 0
    // Predicated region
    $region2: #{tpu_custom_call.1} parent=1 // pred_check
      _
    $region3: #{tpu_custom_call.1} parent=1 // pred_check_branch
      %12 = sbr.rel (0) target = $region5
    $region4: #{tpu_custom_call.1} parent=1 // pred_region
      %14 = vsyncadd [#allocation3], 0
      %s15 = sshll.u32 %s0, 4
      %s16 = int_to_ptr.hbm [resolvable:$true] %s15
      %s17 = sshll.u32 [#allocation2], 4
      %s18 = int_to_ptr.vmem [resolvable:$true] %s17
      %23 = dma.hbm_to_vmem [thread:$0]  %s16, 128, %s18, [#allocation3], 64, 64, 4
    $region5: #{tpu_custom_call.1} parent=1 // pred_fallthru
      _
    // Predicated region
    $region6: #{tpu_custom_call.1} parent=1 // pred_check
      _
    $region7: #{tpu_custom_call.1} parent=1 // pred_check_branch
      %25 = sbr.rel (0) target = $region9
    $region8: #{tpu_custom_call.1} parent=1 // pred_region
      %27 = vsyncadd [#allocation6], 0
      %s28 = sshll.u32 %s1, 4
      %s29 = int_to_ptr.hbm [resolvable:$true] %s28
      %s30 = sshll.u32 [#allocation5], 4
      %s31 = int_to_ptr.vmem [resolvable:$true] %s30
      %36 = dma.hbm_to_vmem [thread:$0]  %s29, 1024, %s31, [#allocation6], 64, 64, 4
    $region9: #{tpu_custom_call.1} parent=1 // pred_fallthru
      _
    // Predicated region
    $region10: #{tpu_custom_call.1} parent=1 // pred_check
      _
    $region11: #{tpu_custom_call.1} parent=1 // pred_check_branch
      %38 = sbr.rel (0) target = $region13
    $region12: #{tpu_custom_call.1} parent=1 // pred_region
      _
    $region13: #{tpu_custom_call.1} parent=1 // pred_fallthru
      _
    // Predicated region
    $region14: #{tpu_custom_call.1} parent=1 // pred_check
      _
    $region15: #{tpu_custom_call.1} parent=1 // pred_check_branch
      %40 = sbr.rel (0) target = $region17
    $region16: #{tpu_custom_call.1} parent=1 // pred_region
      %42 = dma.done [#allocation3], 128
    $region17: #{tpu_custom_call.1} parent=1 // pred_fallthru
      _
    // Predicated region
    $region18: #{tpu_custom_call.1} parent=1 // pred_check
      _
    $region19: #{tpu_custom_call.1} parent=1 // pred_check_branch
      %44 = sbr.rel (0) target = $region21
    $region20: #{tpu_custom_call.1} parent=1 // pred_region
      %46 = dma.done [#allocation6], 1024
    $region21: #{tpu_custom_call.1} parent=1 // pred_fallthru
      _
    %v47 = vld [vmem:[#allocation2] sm:$0xf]
    %v48 = vld [vmem:[#allocation2 + $0x4] sm:$0xf]
    %v49 = vld [vmem:[#allocation5] sm:$0xf]
    %v50 = vld [vmem:[#allocation5 + $0x4] sm:$0xf]
    %v51 = vld [vmem:[#allocation5 + $0x8] sm:$0xf]
    %v52 = vld [vmem:[#allocation5 + $0xc] sm:$0xf]
    %v53 = vld [vmem:[#allocation5 + $0x10] sm:$0xf]
    %v54 = vld [vmem:[#allocation5 + $0x14] sm:$0xf]
    %v55 = vld [vmem:[#allocation5 + $0x18] sm:$0xf]
    %v56 = vld [vmem:[#allocation5 + $0x1c] sm:$0xf]
    %v57 = vld [vmem:[#allocation5 + $0x20] sm:$0xf]
    %v58 = vld [vmem:[#allocation5 + $0x24] sm:$0xf]
    %v59 = vld [vmem:[#allocation5 + $0x28] sm:$0xf]
    %v60 = vld [vmem:[#allocation5 + $0x2c] sm:$0xf]
    %v61 = vld [vmem:[#allocation5 + $0x30] sm:$0xf]
    %v62 = vld [vmem:[#allocation5 + $0x34] sm:$0xf]
    %v63 = vld [vmem:[#allocation5 + $0x38] sm:$0xf]
    %v64 = vld [vmem:[#allocation5 + $0x3c] sm:$0xf]
    %v67 = vunpack.c.l.b16 %v47
    %v68 = vunpack.c.l.b16 %v48
    %v69 = vpack.c.b16 %v68, %v67
    %v87 = vunpack.c.l.b16 %v49
    %v88 = vunpack.c.l.b16 %v50
    %v89 = vunpack.c.l.b16 %v51
    %v90 = vunpack.c.l.b16 %v52
    %v91 = vunpack.c.l.b16 %v53
    %v92 = vunpack.c.l.b16 %v54
    %v93 = vunpack.c.l.b16 %v55
    %v94 = vunpack.c.l.b16 %v56
    %v95 = vunpack.c.l.b16 %v57
    %v96 = vunpack.c.l.b16 %v58
    %v97 = vunpack.c.l.b16 %v59
    %v98 = vunpack.c.l.b16 %v60
    %v99 = vunpack.c.l.b16 %v61
    %v100 = vunpack.c.l.b16 %v62
    %v101 = vunpack.c.l.b16 %v63
    %v102 = vunpack.c.l.b16 %v64
    %v103 = vpack.c.b16 %v88, %v87
    %v104 = vpack.c.b16 %v90, %v89
    %v105 = vpack.c.b16 %v92, %v91
    %v106 = vpack.c.b16 %v94, %v93
    %v107 = vpack.c.b16 %v96, %v95
    %v108 = vpack.c.b16 %v98, %v97
    %v109 = vpack.c.b16 %v100, %v99
    %v110 = vpack.c.b16 %v102, %v101
    %119 = vmatpush.bf16.msra.mxu0 %v110
    %120 = vmatpush.bf16.msra.mxu0 %v109
    %121 = vmatpush.bf16.msra.mxu0 %v108
    %122 = vmatpush.bf16.msra.mxu0 %v107
    %123 = vmatpush.bf16.msra.mxu0 %v106
    %124 = vmatpush.bf16.msra.mxu0 %v105
    %125 = vmatpush.bf16.msra.mxu0 %v104
    %126 = vmatpush.bf16.msra.mxu0 %v103
    %127 = vmatmul.bf16.gmra.mxu0 %v69
    %v128 = vpop.f32.mrf.mxu0
    %v129 = vadd.f32 0.0, %v128
    %v130 = vpop.f32.mrf.mxu0
    %v131 = vadd.f32 0.0, %v130
    %132 = vdwg.mxu0
    %p133 = scmp.eq.s32.totalorder 0, 0
    // Predicated region
    $region22: #{tpu_custom_call.1} parent=1 // pred_check
      %p134 = pneg %p133
    $region23: #{tpu_custom_call.1} parent=1 // pred_check_branch
      %136 = sbr.rel (%p134) target = $region25
    $region24: #{tpu_custom_call.1} parent=1 // pred_region
      %v137 = vld [vmem:[%s2] sm:$0x1]
      %v139 = vperm.slane %v137, 0
      %v141 = vadd.f32 %v129, %v139
      %v142 = vadd.f32 %v131, %v139
      %143 = vst [vmem:[#allocation7] sm:$0xff] %v141
      %144 = vst [vmem:[#allocation7 + $0x8] sm:$0xff] %v142
    $region25: #{tpu_custom_call.1} parent=1 // pred_fallthru
      _
    %p145 = scmp.ne.s32.totalorder 0, 0
    // Predicated region
    $region26: #{tpu_custom_call.1} parent=1 // pred_check
      %p146 = pneg %p145
    $region27: #{tpu_custom_call.1} parent=1 // pred_check_branch
      %148 = sbr.rel (%p146) target = $region29
    $region28: #{tpu_custom_call.1} parent=1 // pred_region
      %v149 = vld [vmem:[#allocation7] sm:$0xff]
      %v150 = vld [vmem:[#allocation7 + $0x8] sm:$0xff]
      %v151 = vadd.f32 %v149, %v129
      %v152 = vadd.f32 %v150, %v131
      %153 = vst [vmem:[#allocation7] sm:$0xff] %v151
      %154 = vst [vmem:[#allocation7 + $0x8] sm:$0xff] %v152
    $region29: #{tpu_custom_call.1} parent=1 // pred_fallthru
      _
    // Predicated region
    $region30: #{tpu_custom_call.1} parent=1 // pred_check
      _
    $region31: #{tpu_custom_call.1} parent=1 // pred_check_branch
      %156 = sbr.rel (0) target = $region33
    $region32: #{tpu_custom_call.1} parent=1 // pred_region
      %158 = vsyncadd [#allocation4], 0
      %s159 = sshll.u32 [#allocation7], 4
      %s160 = int_to_ptr.vmem [resolvable:$true] %s159
      %s161 = sshll.u32 %s3, 4
      %s162 = int_to_ptr.hbm [resolvable:$true] %s161
      %167 = dma.vmem_to_hbm [thread:$0]  %s160, 256, %s162, [#allocation4], 128, 128, 8
    $region33: #{tpu_custom_call.1} parent=1 // pred_fallthru
      _
    // Predicated region
    $region34: #{tpu_custom_call.1} parent=1 // pred_check
      _
    $region35: #{tpu_custom_call.1} parent=1 // pred_check_branch
      %169 = sbr.rel (0) target = $region37
    $region36: #{tpu_custom_call.1} parent=1 // pred_region
      %171 = dma.done [#allocation4], 256
    $region37: #{tpu_custom_call.1} parent=1 // pred_fallthru
      _
    %172 = vsyncpa [#allocation3], 1
    %173 = vsyncpa [#allocation6], 1
    %174 = vsyncpa [#allocation4], 1

</llo_original>
